<compile_context>
chip_gen: v7x
topology: tpu7x:2x2x1
jax: 0.10.0
libtpu: 0.0.40
codegen_flags: <defaults>
</compile_context>

<pallas_src>
import jax
import jax.numpy as jnp
from jax import lax
from jax.experimental import pallas as pl
from jax.experimental.pallas import tpu as pltpu


def _round_up(x, m):
    return ((x + m - 1) // m) * m


def _cond_conv1x1_kernel(cond_ref, wct_ref, spk_ref, out_ref):
    # cond_ref: [1, tT, C_g]    channels-last input tile (f32 or bf16)
    # wct_ref:  [C_out, C_g]    cond part of the Conv1d weight (same dtype as cond)
    # spk_ref:  [1, C_out, 1]   precomputed spk_emb @ W_spk^T + bias  (f32)
    # out_ref:  [1, C_out, tT]  NCT output tile -> T on lanes (single lane-dense store)
    x = cond_ref[0]                                   # [tT, C_g]
    w = wct_ref[...]                                  # [C_out, C_g]
    # y[o, t] = sum_c w[o, c] * x[t, c]  -- (1,1)-contracting dot_general so the
    # T-on-sublanes -> T-on-lanes move rides the MXU operand path (no data transpose).
    # TODO(synk): verify via pl.lower_as_mlir that no explicit VMEM copy/transpose of
    #             the [tT, C_g] tile is materialized before the MXU push.
    y = lax.dot_general(
        w, x,
        dimension_numbers=(((1,), (1,)), ((), ())),
        preferred_element_type=jnp.float32,
    )                                                 # [C_out, tT]  f32
    y = y + spk_ref[0]                                # + [C_out, 1] broadcast over T (f32 epilogue)
    out_ref[0] = y.astype(out_ref.dtype)


def generator_cond_conv(cond_btc, spk_emb, weight, bias, *,
                        t_tile=4096, compute_dtype=None, out_dtype=None):
    """Fused [concat(cond, spk_emb_broadcast) -> Conv1d(k=1)].

    cond_btc: [B, T, C_g]      (PyTorch `cond` before transpose)
    spk_emb:  [B, C_spk]
    weight:   [C_out, C_in, 1] (PyTorch Conv1d weight, C_in = C_g + C_spk)
    bias:     [C_out]
    returns:  [B, C_out, T]    (same layout as PyTorch `self.conv(cond.transpose(1,2))`)

    t_tile:        preferred T tile (lanes); must be a multiple of 128.  Default 4096
                   amortizes per-grid-step overhead on long audio T while keeping
                   double-buffered VMEM ~5 MiB in f32 (safe on every generation).
    compute_dtype: dtype fed to the MXU (cast of cond + cond-weight).  Pass
                   jnp.bfloat16 to roughly halve HBM input traffic; accumulation stays f32.
    out_dtype:     output dtype (default: cond dtype).  Pass jnp.bfloat16 if the consumer
                   tolerates it to halve the dominant output stream.
    """
    B, T, C_g = cond_btc.shape
    C_spk = spk_emb.shape[1]
    C_out, C_in, k = weight.shape
    assert k == 1 and C_in == C_g + C_spk
    assert t_tile % 128 == 0, "t_tile must be a multiple of 128"

    compute_dtype = jnp.dtype(compute_dtype) if compute_dtype is not None else cond_btc.dtype
    out_dtype = jnp.dtype(out_dtype) if out_dtype is not None else cond_btc.dtype

    cond_in = cond_btc.astype(compute_dtype)
    w2d = weight[:, :, 0]                                     # [C_out, C_in]
    w_cond = w2d[:, :C_g].astype(compute_dtype)               # [C_out, C_g]
    w_spk = w2d[:, C_g:]                                      # [C_out, C_spk]

    # Hoisted speaker projection + bias (tiny XLA matmul), kept in f32 for the epilogue add.
    spk_proj = (spk_emb.astype(jnp.float32) @ jnp.transpose(w_spk).astype(jnp.float32)
                + bias.astype(jnp.float32))                   # [B, C_out]
    spk_proj = spk_proj.reshape(B, C_out, 1)                  # [B, C_out, 1]  f32

    # ---- T tile selection --------------------------------------------------------
    tT = t_tile
    if B == 1:
        # v7x megacore: keep >= 2 parallel grid steps so both TensorCores are fed.
        tT = min(tT, _round_up(pl.cdiv(T, 2), 128))
    if T <= tT:
        # Single full-extent tile (block dim == array dim, so no (8,128) constraint).
        # NOTE: for T < 128 the NCT store is masked (vst.msk); negligible at such sizes,
        # long-audio T is the target regime.
        tT = T
        n_t = 1
    else:
        n_t = pl.cdiv(T, tT)
        # Rebalance so the last tile is not nearly empty; keeps tT a 128-multiple.
        tT = _round_up(pl.cdiv(T, n_t), 128)
        n_t = pl.cdiv(T, tT)
    grid = (B, n_t)

    # ---- VMEM budget (lane padding + double buffering) ----------------------------
    in_isz = jnp.dtype(compute_dtype).itemsize
    out_isz = jnp.dtype(out_dtype).itemsize
    # input tile [tT, C_g] pads C_g -> 128 lanes; output tile [C_out, tT] pads C_out -> x8 sublanes.
    vmem_est = 2 * (tT * 128 * in_isz + _round_up(C_out, 8) * tT * out_isz)
    vmem_est += 4 * 128 * 128 * 4                             # weight + spk_proj blocks (tiny)
    compiler_kwargs = dict(dimension_semantics=("parallel", "parallel"))
    if vmem_est > 16 * 1024 * 1024:   # above v5e's scoped default -> raise it explicitly
        compiler_kwargs["vmem_limit_bytes"] = int(min(2 * vmem_est, 48 * 1024 * 1024))

    # ---- Cost hint for the XLA scheduler -------------------------------------------
    cost = pl.CostEstimate(
        flops=2 * B * T * C_out * C_g,
        transcendentals=0,
        bytes_accessed=(B * T * C_g * in_isz          # cond in
                        + C_out * C_g * in_isz        # weight
                        + B * C_out * 4               # spk_proj (f32)
                        + B * C_out * T * out_isz),   # output
    )

    out = pl.pallas_call(
        _cond_conv1x1_kernel,
        out_shape=jax.ShapeDtypeStruct((B, C_out, T), out_dtype),
        grid_spec=pltpu.PrefetchScalarGridSpec(
            num_scalar_prefetch=0,
            grid=grid,
            in_specs=[
                pl.BlockSpec((1, tT, C_g), lambda b, t: (b, t, 0)),
                pl.BlockSpec((C_out, C_g), lambda b, t: (0, 0)),
                pl.BlockSpec((1, C_out, 1), lambda b, t: (b, 0, 0)),
            ],
            out_specs=pl.BlockSpec((1, C_out, tT), lambda b, t: (b, 0, t)),
        ),
        compiler_params=pltpu.CompilerParams(**compiler_kwargs),
        cost_estimate=cost,
    )(cond_in, w_cond, spk_proj)
    return out


def generator_cond_conv_ref(cond_btc, spk_emb, weight, bias):
    """Pure-JAX f32 reference of the same PyTorch ops (for correctness check)."""
    B, T, _ = cond_btc.shape
    spk_pad = jnp.broadcast_to(spk_emb[:, None, :], (B, T, spk_emb.shape[1]))
    cat = jnp.concatenate([cond_btc, spk_pad], axis=-1)          # [B, T, C_in]
    x_nct = jnp.transpose(cat, (0, 2, 1))                        # [B, C_in, T]
    w2d = weight[:, :, 0]                                        # [C_out, C_in]
    out = jnp.einsum("oc,bct->bot", w2d, x_nct) + bias[None, :, None]
    return out                                                    # [B, C_out, T]


if __name__ == "__main__":
    # Small, forward-consistent shapes.
    B = 2          # batch
    T = 16         # time frames
    C_g = 24       # content-cond channels
    C_spk = 8      # speaker-embedding channels
    hidden_in = C_g + C_spk   # 32  (config['hidden_in'])
    hidden_out = 32           #     (config['hidden_out'])

    key = jax.random.PRNGKey(0)
    k_cond, k_spk, k_w, k_b = jax.random.split(key, 4)

    cond = jax.random.normal(k_cond, (B, T, C_g), dtype=jnp.float32)      # [B, T, C_g]
    spk_emb = jax.random.normal(k_spk, (B, C_spk), dtype=jnp.float32)     # [B, C_spk]
    weight = 0.1 * jax.random.normal(k_w, (hidden_out, hidden_in, 1), dtype=jnp.float32)
    bias = 0.1 * jax.random.normal(k_b, (hidden_out,), dtype=jnp.float32)

    # 1) Tiny-T path (single full-extent T tile per batch element), f32.
    out = jax.block_until_ready(generator_cond_conv(cond, spk_emb, weight, bias))
    ref = generator_cond_conv_ref(cond, spk_emb, weight, bias)
    assert out.shape == (B, hidden_out, T)
    assert jnp.allclose(out, ref, atol=1e-5, rtol=1e-5), "mismatch vs reference (small T)"

    # 2) Tiled-T path (multi-tile pipelined grid + lane-dense NCT stores), f32.
    T2 = 256
    cond2 = jax.random.normal(jax.random.PRNGKey(1), (B, T2, C_g), dtype=jnp.float32)
    out2 = jax.block_until_ready(
        generator_cond_conv(cond2, spk_emb, weight, bias, t_tile=128))
    ref2 = generator_cond_conv_ref(cond2, spk_emb, weight, bias)
    assert out2.shape == (B, hidden_out, T2)
    assert jnp.allclose(out2, ref2, atol=1e-5, rtol=1e-5), "mismatch vs reference (tiled T)"

    # 3) B=1 path: default tile, T auto-split into >=2 parallel steps (v7x both-TC feed).
    T3 = 512
    cond3 = jax.random.normal(jax.random.PRNGKey(2), (1, T3, C_g), dtype=jnp.float32)
    spk3 = spk_emb[:1]
    out3 = jax.block_until_ready(generator_cond_conv(cond3, spk3, weight, bias))
    ref3 = generator_cond_conv_ref(cond3, spk3, weight, bias)
    assert out3.shape == (1, hidden_out, T3)
    assert jnp.allclose(out3, ref3, atol=1e-5, rtol=1e-5), "mismatch vs reference (B=1 split)"

    # 4) bf16 in/out path (halved HBM traffic); relaxed tolerance vs the f32 reference.
    out4 = jax.block_until_ready(
        generator_cond_conv(cond2, spk_emb, weight, bias, t_tile=128,
                            compute_dtype=jnp.bfloat16, out_dtype=jnp.bfloat16))
    assert out4.dtype == jnp.bfloat16 and out4.shape == (B, hidden_out, T2)
    assert jnp.allclose(out4.astype(jnp.float32), ref2, atol=5e-2, rtol=5e-2), \
        "mismatch vs reference (bf16 path)"

    print("KERNEL_OK")
</pallas_src>

<mosaic_0001>
module attributes {stable_mosaic.version = 11 : i64} {
  func.func @_cond_conv1x1_kernel(%arg0: i32, %arg1: i32, %arg2: memref<1x16x24xf32, #tpu.memory_space<vmem>>, %arg3: memref<32x24xf32, #tpu.memory_space<vmem>>, %arg4: memref<1x32x1xf32, #tpu.memory_space<vmem>>, %arg5: memref<1x32x16xf32, #tpu.memory_space<vmem>>) attributes {dimension_semantics = [#tpu.dimension_semantics<parallel>, #tpu.dimension_semantics<parallel>], iteration_bounds = array<i64: 2, 1>, scalar_prefetch = 0 : i64, scratch_operands = 0 : i64, tpu.core_type = #tpu.core_type<tc>, window_params = [{transform_indices = @transform_0, window_bounds = array<i64: 1, 16, 24>}, {pipeline_mode = #tpu.pipeline_mode<synchronous>, transform_indices = @transform_1, window_bounds = array<i64: 32, 24>}, {transform_indices = @transform_2, window_bounds = array<i64: 1, 32, 1>}, {transform_indices = @transform_3, window_bounds = array<i64: 1, 32, 16>}]} {
    %c0 = arith.constant 0 : index
    %c0_0 = arith.constant 0 : index
    %c0_1 = arith.constant 0 : index
    %0 = vector.load %arg2[%c0, %c0_0, %c0_1] : memref<1x16x24xf32, #tpu.memory_space<vmem>>, vector<1x16x24xf32>
    %1 = vector.shape_cast %0 : vector<1x16x24xf32> to vector<16x24xf32>
    %c0_2 = arith.constant 0 : index
    %c0_3 = arith.constant 0 : index
    %2 = vector.load %arg3[%c0_2, %c0_3] : memref<32x24xf32, #tpu.memory_space<vmem>>, vector<32x24xf32>
    %cst = arith.constant dense<0.000000e+00> : vector<32x16xf32>
    %3 = tpu.matmul %2, %1, %cst {dimension_numbers = #tpu.dot_dimension_numbers<[1], [1], [0], [0], [0, 0, 1, 0], [], []>} : vector<32x24xf32>, vector<16x24xf32>, vector<32x16xf32> -> vector<32x16xf32>
    %c0_4 = arith.constant 0 : index
    %c0_5 = arith.constant 0 : index
    %c0_6 = arith.constant 0 : index
    %4 = vector.load %arg4[%c0_4, %c0_5, %c0_6] : memref<1x32x1xf32, #tpu.memory_space<vmem>>, vector<1x32x1xf32>
    %5 = vector.shape_cast %4 : vector<1x32x1xf32> to vector<32x1xf32>
    %6 = vector.broadcast %5 : vector<32x1xf32> to vector<32x16xf32>
    %7 = arith.addf %3, %6 : vector<32x16xf32>
    %c0_7 = arith.constant 0 : index
    %c0_8 = arith.constant 0 : index
    %c0_9 = arith.constant 0 : index
    %8 = vector.load %arg5[%c0_7, %c0_8, %c0_9] : memref<1x32x16xf32, #tpu.memory_space<vmem>>, vector<1x32x16xf32>
    %9 = vector.shape_cast %8 : vector<1x32x16xf32> to vector<32x16xf32>
    %10 = vector.shape_cast %7 : vector<32x16xf32> to vector<1x32x16xf32>
    tpu.vector_store %arg5[%c0_7, %c0_8, %c0_9], %10 {strides = array<i32>} : memref<1x32x16xf32, #tpu.memory_space<vmem>>, vector<1x32x16xf32>,
    return
  }
  func.func @transform_0(%arg0: i32, %arg1: i32) -> (i32, i32, i32) {
    %c0_i32 = arith.constant 0 : i32
    %c0_i32_0 = arith.constant 0 : i32
    return %arg0, %arg1, %c0_i32 : i32, i32, i32
  }
  func.func @transform_1(%arg0: i32, %arg1: i32) -> (i32, i32) {
    %c0_i32 = arith.constant 0 : i32
    %c0_i32_0 = arith.constant 0 : i32
    %c0_i32_1 = arith.constant 0 : i32
    return %c0_i32, %c0_i32_0 : i32, i32
  }
  func.func @transform_2(%arg0: i32, %arg1: i32) -> (i32, i32, i32) {
    %c0_i32 = arith.constant 0 : i32
    %c0_i32_0 = arith.constant 0 : i32
    %c0_i32_1 = arith.constant 0 : i32
    return %arg0, %c0_i32, %c0_i32_0 : i32, i32, i32
  }
  func.func @transform_3(%arg0: i32, %arg1: i32) -> (i32, i32, i32) {
    %c0_i32 = arith.constant 0 : i32
    %c0_i32_0 = arith.constant 0 : i32
    return %arg0, %c0_i32, %arg1 : i32, i32, i32
  }
}

</mosaic_0001>

<llo_original>
// kernel: tpu_custom_call.1
$region0: #{tpu_custom_call.1}
  #allocation0 [shape = 'u32[]', space=smem, size = 0x4, offset = 0x4, fixed_abs, tag = 'smem constant byte address 0x4 - core index']
  #allocation1 [shape = 'u32[144,128]{1,0:T(1,128)}', space=vmem, size = 0x12000, scoped, tag = 'internal scratch']
  %s0 = inlined_call_operand.vmem [shape: f32[2,16,24], index: 0, kind: input, shape index: {}]
  %s1 = inlined_call_operand.vmem [shape: f32[32,24], index: 1, kind: input, shape index: {}]
  %s2 = inlined_call_operand.vmem [shape: f32[2,32,1], index: 2, kind: input, shape index: {}]
  %s3 = inlined_call_operand.vmem [shape: f32[2,32,16], index: 3, kind: output, shape index: {}]
  %s4 = sld [smem:[#allocation0]]
  $region45: #{tpu_custom_call.1} parent=0
    _
  %s6 = ssub.s32 1, %s4
  %s7 = scalar_select 0, %s6, %s4
  loop: start=0, step=1, limit=4
  $region2: #{tpu_custom_call.1} parent=0 // loop_pre_header
    _
  $region3: #{tpu_custom_call.1} parent=0 // loop_header
    %s9 = sphi 0, %s13
    %p10 = scmp.ge.s32.totalorder %s9, 4
    %s16 = sphi 0, %s28
    %s17 = sphi 0, %s24
    %s18 = sphi 0, %s16
    %s19 = sphi 0, %s17
    %s20 = sphi 0, %s18
    %s21 = sphi 0, %s19
    %s33 = sphi 0, %s35
    %s36 = sphi 0, %s33
    %s37 = sphi 0, %s36
    %s53 = sphi 0, %s37
    %s57 = sphi 0, %s57
    %s59 = sphi 0, %s57
    %s60 = sphi 0, %s59
    %s74 = sphi 0, %s60
    %s80 = sphi 0, %s82
    %s83 = sphi 0, %s80
    %s84 = sphi 0, %s83
    %s100 = sphi 0, %s84
    %s108 = sphi 0, %s110
    %s111 = sphi 0, %s108
    %s112 = sphi 0, %s111
    %s128 = sphi 0, %s112
  $region4: #{tpu_custom_call.1} parent=0 // loop_header_branch
    %12 = sbr.rel (%p10) target = $region8
  $region5: #{tpu_custom_call.1} parent=0 // loop_body
    %s14 = ssub.s32 %s9, 1
    %s15 = ssub.s32 %s9, 2
    %s22 = sadd.s32 1, %s17
    %p23 = scmp.ge.s32.totalorder %s22, 1
    %s24 = scalar_select %p23, 0, %s22
    %s25 = sadd.s32 1, %s16
    %s26 = scalar_select %p23, %s25, %s16
    %p27 = scmp.ge.s32.totalorder %s26, 2
    %s28 = scalar_select %p27, 0, %s26
    %s29 = ssub.s32 %s16, %s28
    %s30 = ssub.s32 %s17, %s24
    %s31 = sor.u32 %s29, %s30
    %p32 = scmp.eq.s32.totalorder %s31, 0
    %s34 = sadd.s32 %s33, 1
    %s35 = scalar_select %p32, %s33, %s34
    %p38 = pneg %p32
    %p39 = scmp.eq.s32.totalorder %s9, 1
    %p40 = por %p38, %p39
    %p41 = scmp.ne.s32.totalorder %s33, %s36
    %p42 = scmp.eq.s32.totalorder %s9, 0
    %p43 = por %p41, %p42
    %p44 = scmp.ne.s32.totalorder %s33, %s36
    %p45 = scmp.eq.s32.totalorder %s14, 1
    %p46 = por %p44, %p45
    %p47 = scmp.ne.s32.totalorder %s36, %s37
    %p48 = scmp.eq.s32.totalorder %s14, 0
    %p49 = por %p47, %p48
    %p50 = scmp.ne.s32.totalorder %s36, %s37
    %p51 = scmp.eq.s32.totalorder %s15, 1
    %p52 = por %p50, %p51
    %p54 = scmp.ne.s32.totalorder %s37, %s53
    %p55 = scmp.eq.s32.totalorder %s15, 0
    %p56 = por %p54, %p55
    %s58 = sadd.s32 %s57, 1
    %p61 = scmp.eq.s32.totalorder %s9, 1
    %p62 = scmp.ne.s32.totalorder %s57, %s59
    %p63 = scmp.eq.s32.totalorder %s9, 0
    %p64 = por %p62, %p63
    %p65 = scmp.ne.s32.totalorder %s57, %s59
    %p66 = scmp.eq.s32.totalorder %s14, 1
    %p67 = por %p65, %p66
    %p68 = scmp.ne.s32.totalorder %s59, %s60
    %p69 = scmp.eq.s32.totalorder %s14, 0
    %p70 = por %p68, %p69
    %p71 = scmp.ne.s32.totalorder %s59, %s60
    %p72 = scmp.eq.s32.totalorder %s15, 1
    %p73 = por %p71, %p72
    %p75 = scmp.ne.s32.totalorder %s60, %s74
    %p76 = scmp.eq.s32.totalorder %s15, 0
    %p77 = por %p75, %p76
    %s78 = ssub.s32 %s16, %s28
    %p79 = scmp.eq.s32.totalorder %s78, 0
    %s81 = sadd.s32 %s80, 1
    %s82 = scalar_select %p79, %s80, %s81
    %p85 = pneg %p79
    %p86 = scmp.eq.s32.totalorder %s9, 1
    %p87 = por %p85, %p86
    %p88 = scmp.ne.s32.totalorder %s80, %s83
    %p89 = scmp.eq.s32.totalorder %s9, 0
    %p90 = por %p88, %p89
    %p91 = scmp.ne.s32.totalorder %s80, %s83
    %p92 = scmp.eq.s32.totalorder %s14, 1
    %p93 = por %p91, %p92
    %p94 = scmp.ne.s32.totalorder %s83, %s84
    %p95 = scmp.eq.s32.totalorder %s14, 0
    %p96 = por %p94, %p95
    %p97 = scmp.ne.s32.totalorder %s83, %s84
    %p98 = scmp.eq.s32.totalorder %s15, 1
    %p99 = por %p97, %p98
    %p101 = scmp.ne.s32.totalorder %s84, %s100
    %p102 = scmp.eq.s32.totalorder %s15, 0
    %p103 = por %p101, %p102
    %s104 = ssub.s32 %s16, %s28
    %s105 = ssub.s32 %s17, %s24
    %s106 = sor.u32 %s104, %s105
    %p107 = scmp.eq.s32.totalorder %s106, 0
    %s109 = sadd.s32 %s108, 1
    %s110 = scalar_select %p107, %s108, %s109
    %p113 = pneg %p107
    %p114 = scmp.eq.s32.totalorder %s9, 1
    %p115 = por %p113, %p114
    %p116 = scmp.ne.s32.totalorder %s108, %s111
    %p117 = scmp.eq.s32.totalorder %s9, 0
    %p118 = por %p116, %p117
    %p119 = scmp.ne.s32.totalorder %s108, %s111
    %p120 = scmp.eq.s32.totalorder %s14, 1
    %p121 = por %p119, %p120
    %p122 = scmp.ne.s32.totalorder %s111, %s112
    %p123 = scmp.eq.s32.totalorder %s14, 0
    %p124 = por %p122, %p123
    %p125 = scmp.ne.s32.totalorder %s111, %s112
    %p126 = scmp.eq.s32.totalorder %s15, 1
    %p127 = por %p125, %p126
    %p129 = scmp.ne.s32.totalorder %s112, %s128
    %p130 = scmp.eq.s32.totalorder %s15, 0
    %p131 = por %p129, %p130
    %p132 = scmp.le.s32.totalorder 1, %s9
    %p133 = scmp.lt.s32.totalorder %s9, 3
    %p134 = pnand %p132, %p133
    %p135 = pneg %p134
    // Predicated region
    $region9: #{tpu_custom_call.1} parent=5 // pred_check
      _
    $region10: #{tpu_custom_call.1} parent=5 // pred_check_branch
      %137 = sbr.rel (%p134) target = $region12
    $region11: #{tpu_custom_call.1} parent=5 // pred_region
      %s138 = ssub.s32 %s9, 1
      // Predicated region
      $region13: #{tpu_custom_call.1} parent=11 // pred_check
        %p139 = pneg %p70
      $region14: #{tpu_custom_call.1} parent=11 // pred_check_branch
        %141 = sbr.rel (%p139) target = $region16
      $region15: #{tpu_custom_call.1} parent=11 // pred_region
        _
      $region16: #{tpu_custom_call.1} parent=11 // pred_fallthru
        _
    $region12: #{tpu_custom_call.1} parent=5 // pred_fallthru
      _
    %p142 = scmp.lt.s32.totalorder %s9, 2
    // Predicated region
    $region17: #{tpu_custom_call.1} parent=5 // pred_check
      %p143 = pneg %p142
    $region18: #{tpu_custom_call.1} parent=5 // pred_check_branch
      %145 = sbr.rel (%p143) target = $region20
    $region19: #{tpu_custom_call.1} parent=5 // pred_region
      // Predicated region
      $region21: #{tpu_custom_call.1} parent=19 // pred_check
        %p146 = pneg %p43
      $region22: #{tpu_custom_call.1} parent=19 // pred_check_branch
        %148 = sbr.rel (%p146) target = $region24
      $region23: #{tpu_custom_call.1} parent=19 // pred_region
        %s149 = smul.u32 2, %s17
        %p150 = scmp.lt.s32.totalorder %s16, 1
        %s151 = scalar_select %p150, %s16, 1
        %p152 = scmp.lt.s32.totalorder %s149, 1
        %s153 = scalar_select %p152, %s149, 1
        %s154 = smul.addr %s151, 2
        %s155 = sadd.s32 %s153, %s154
        %s156 = smul.addr %s155, 8
        %s157 = scalar_lea.vmem %s0, %s156
        %s158 = smul.u32 2, %s17
      $region24: #{tpu_custom_call.1} parent=19 // pred_fallthru
        _
      // Predicated region
      $region25: #{tpu_custom_call.1} parent=19 // pred_check
        %p159 = pneg %p90
      $region26: #{tpu_custom_call.1} parent=19 // pred_check_branch
        %161 = sbr.rel (%p159) target = $region28
      $region27: #{tpu_custom_call.1} parent=19 // pred_region
        %p162 = scmp.lt.s32.totalorder %s16, 1
        %s163 = scalar_select %p162, %s16, 1
        %s164 = smul.addr %s163, 4
        %s165 = smul.addr %s164, 8
        %s166 = scalar_lea.vmem %s2, %s165
      $region28: #{tpu_custom_call.1} parent=19 // pred_fallthru
        _
    $region20: #{tpu_custom_call.1} parent=5 // pred_fallthru
      _
    %p167 = scmp.le.s32.totalorder 1, %s9
    %p168 = scmp.lt.s32.totalorder %s9, 3
    %p169 = pnand %p167, %p168
    %p170 = pneg %p169
    // Predicated region
    $region29: #{tpu_custom_call.1} parent=5 // pred_check
      _
    $region30: #{tpu_custom_call.1} parent=5 // pred_check_branch
      %172 = sbr.rel (%p169) target = $region32
    $region31: #{tpu_custom_call.1} parent=5 // pred_region
      %s173 = ssub.s32 %s9, 1
      %s174 = smul.u32 2, %s19
      %p175 = scmp.lt.s32.totalorder %s18, 1
      %s176 = scalar_select %p175, %s18, 1
      %p177 = scmp.lt.s32.totalorder %s174, 1
      %s178 = scalar_select %p177, %s174, 1
      %s179 = smul.addr %s176, 2
      %s180 = sadd.s32 %s178, %s179
      %s181 = smul.addr %s180, 8
      %s182 = scalar_lea.vmem %s0, %s181
      %p183 = pneg %p49
      %p184 = pneg %p46
      %p185 = pneg %p70
      %p186 = pneg %p67
      %p187 = scmp.lt.s32.totalorder %s18, 1
      %s188 = scalar_select %p187, %s18, 1
      %s189 = smul.addr %s188, 4
      %s190 = smul.addr %s189, 8
      %s191 = scalar_lea.vmem %s2, %s190
      %p192 = pneg %p96
      %p193 = pneg %p93
      %p194 = pneg %p124
      %p195 = pneg %p121
      %p196 = scmp.lt.s32.totalorder %s18, 1
      %s197 = scalar_select %p196, %s18, 1
      %p198 = scmp.lt.s32.totalorder %s19, 0
      %s199 = scalar_select %p198, %s19, 0
      %s200 = smul.addr %s197, 4
      %s201 = sadd.s32 %s199, %s200
      %s202 = smul.addr %s201, 8
      %s203 = scalar_lea.vmem %s3, %s202
      %s204 = smul.u32 2, %s19
      %p205 = scmp.lt.s32.totalorder %s18, 1
      %s206 = scalar_select %p205, %s18, 1
      %p207 = scmp.lt.s32.totalorder %s204, 1
      %s208 = scalar_select %p207, %s204, 1
      %s209 = smul.addr %s206, 2
      %s210 = sadd.s32 %s208, %s209
      %s211 = smul.addr %s210, 8
      %s212 = scalar_lea.vmem %s0, %s211
      %s213 = smul.u32 2, %s19
      %p214 = scmp.lt.s32.totalorder %s18, 1
      %s215 = scalar_select %p214, %s18, 1
      %s216 = smul.addr %s215, 4
      %s217 = smul.addr %s216, 8
      %s218 = scalar_lea.vmem %s2, %s217
      %p219 = scmp.lt.s32.totalorder %s18, 1
      %s220 = scalar_select %p219, %s18, 1
      %p221 = scmp.lt.s32.totalorder %s19, 0
      %s222 = scalar_select %p221, %s19, 0
      %s223 = smul.addr %s220, 4
      %s224 = sadd.s32 %s222, %s223
      %s225 = smul.addr %s224, 8
      %s226 = scalar_lea.vmem %s3, %s225
      %v227 = vld [vmem:[%s212] sm:$0xff]
      %v228 = vld [vmem:[%s212 + $0x8] sm:$0xff]
      %v229 = vld [vmem:[%s1] sm:$0xff]
      %v230 = vld [vmem:[%s1 + $0x8] sm:$0xff]
      %v231 = vld [vmem:[%s1 + $0x10] sm:$0xff]
      %v232 = vld [vmem:[%s1 + $0x18] sm:$0xff]
      %v233 = vld [vmem:[%s218] sm:$0xff]
      %v234 = vld [vmem:[%s218 + $0x8] sm:$0xff]
      %v235 = vld [vmem:[%s218 + $0x10] sm:$0xff]
      %v236 = vld [vmem:[%s218 + $0x18] sm:$0xff]
      %238 = vset.pattern.permute.xlu0 0
      %239 = vperm.xlu0 %238, %v233
      %v240 = vpop.permute.xlu0 %239
      %243 = vset.pattern.permute.xlu0 0
      %244 = vperm.xlu0 %243, %v234
      %v245 = vpop.permute.xlu0 %244
      %248 = vset.pattern.permute.xlu0 0
      %249 = vperm.xlu0 %248, %v235
      %v250 = vpop.permute.xlu0 %249
      %253 = vset.pattern.permute.xlu0 0
      %254 = vperm.xlu0 %253, %v236
      %v255 = vpop.permute.xlu0 %254
      %vm257 = vcmask 195584
      %v259 = vsel %vm257, %v229, 0
      %v262 = vsel %vm257, %v230, 0
      %v265 = vsel %vm257, %v231, 0
      %v268 = vsel %vm257, %v232, 0
      %v271 = vsel %vm257, %v227, 0
      %v274 = vsel %vm257, %v228, 0
      %276 = vmatprep.subr.mxu0 0.0
      %277 = vmatpush1.xpose.msra.mxu0 %v271
      %278 = vmatprep.subr.mxu0 0.0
      %279 = vmatpush1.xpose.msra.mxu0 %v274
      %280 = vmatprep.subr.mxu0 0.0
      %281 = vmatpush1.xpose.msra.mxu0 0.0
      %282 = vmatprep.subr.mxu0 0.0
      %283 = vmatpush1.xpose.msra.mxu0 0.0
      %284 = vmatprep.subr.mxu0 0.0
      %285 = vmatpush1.xpose.msra.mxu0 0.0
      %286 = vmatprep.subr.mxu0 0.0
      %287 = vmatpush1.xpose.msra.mxu0 0.0
      %288 = vmatprep.subr.mxu0 0.0
      %289 = vmatpush1.xpose.msra.mxu0 0.0
      %290 = vmatprep.subr.mxu0 0.0
      %291 = vmatpush1.xpose.msra.mxu0 0.0
      %292 = vmatprep.subr.mxu0 0.0
      %293 = vmatpush1.xpose.msra.mxu0 0.0
      %294 = vmatprep.subr.mxu0 0.0
      %295 = vmatpush1.xpose.msra.mxu0 0.0
      %296 = vmatprep.subr.mxu0 0.0
      %297 = vmatpush1.xpose.msra.mxu0 0.0
      %298 = vmatprep.subr.mxu0 0.0
      %299 = vmatpush1.xpose.msra.mxu0 0.0
      %300 = vmatprep.subr.mxu0 0.0
      %301 = vmatpush1.xpose.msra.mxu0 0.0
      %302 = vmatprep.subr.mxu0 0.0
      %303 = vmatpush1.xpose.msra.mxu0 0.0
      %304 = vmatprep.subr.mxu0 0.0
      %305 = vmatpush1.xpose.msra.mxu0 0.0
      %306 = vmatprep.subr.mxu0 0.0
      %307 = vmatpush1.xpose.msra.mxu0 0.0
      %308 = vmatprep.subr.mxu0 0.0
      %309 = vmatpush1.xpose.msra.mxu0 0.0
      %310 = vmatprep.subr.mxu0 0.0
      %311 = vmatpush1.xpose.msra.mxu0 0.0
      %312 = vmatprep.subr.mxu0 0.0
      %313 = vmatpush1.xpose.msra.mxu0 0.0
      %314 = vmatprep.subr.mxu0 0.0
      %315 = vmatpush1.xpose.msra.mxu0 0.0
      %316 = vmatprep.subr.mxu0 0.0
      %317 = vmatpush1.xpose.msra.mxu0 0.0
      %318 = vmatprep.subr.mxu0 0.0
      %319 = vmatpush1.xpose.msra.mxu0 0.0
      %320 = vmatprep.subr.mxu0 0.0
      %321 = vmatpush1.xpose.msra.mxu0 0.0
      %322 = vmatprep.subr.mxu0 0.0
      %323 = vmatpush1.xpose.msra.mxu0 0.0
      %324 = vmatprep.subr.mxu0 0.0
      %325 = vmatpush1.xpose.msra.mxu0 0.0
      %326 = vmatprep.subr.mxu0 0.0
      %327 = vmatpush1.xpose.msra.mxu0 0.0
      %328 = vmatprep.subr.mxu0 0.0
      %329 = vmatpush1.xpose.msra.mxu0 0.0
      %330 = vmatprep.subr.mxu0 0.0
      %331 = vmatpush1.xpose.msra.mxu0 0.0
      %332 = vmatprep.subr.mxu0 0.0
      %333 = vmatpush1.xpose.msra.mxu0 0.0
      %334 = vmatprep.subr.mxu0 0.0
      %335 = vmatpush1.xpose.msra.mxu0 0.0
      %336 = vmatprep.subr.mxu0 0.0
      %337 = vmatpush1.xpose.msra.mxu0 0.0
      %338 = vmatprep.subr.mxu0 0.0
      %339 = vmatpush1.xpose.msra.mxu0 0.0
      %340 = vmatprep.mubr.f32.mxu0 0.0
      %341 = vmatmul.mubr.f32.gmra.mrb[0].mxu0 %v259
      %v342 = vpop.f32.mrb[0].mxu0
      %v343 = vadd.f32 %v240, %v342
      %v344 = vpop.f32.mrb[0].mxu0
      %345 = vmatprep.mubr.f32.mxu0 0.0
      %346 = vmatmul.mubr.f32.gmra.mrb[0].mxu0 %v262
      %v347 = vpop.f32.mrb[0].mxu0
      %v348 = vadd.f32 %v245, %v347
      %v349 = vpop.f32.mrb[0].mxu0
      %350 = vmatprep.mubr.f32.mxu0 0.0
      %351 = vmatmul.mubr.f32.gmra.mrb[0].mxu0 %v265
      %v352 = vpop.f32.mrb[0].mxu0
      %v353 = vadd.f32 %v250, %v352
      %v354 = vpop.f32.mrb[0].mxu0
      %355 = vmatprep.mubr.f32.mxu0 0.0
      %356 = vmatmul.mubr.f32.gmra.mrb[0].mxu0 %v268
      %v357 = vpop.f32.mrb[0].mxu0
      %v358 = vadd.f32 %v255, %v357
      %v359 = vpop.f32.mrb[0].mxu0
      %360 = vdwg.mxu0
      %vm361 = vcmask 130048
      %362 = vst.msk [vmem:[%s226] sm:$0xff] %vm361, %v343
      %363 = vst.msk [vmem:[%s226 + $0x8] sm:$0xff] %vm361, %v348
      %364 = vst.msk [vmem:[%s226 + $0x10] sm:$0xff] %vm361, %v353
      %365 = vst.msk [vmem:[%s226 + $0x18] sm:$0xff] %vm361, %v358
      %p366 = scmp.lt.s32.totalorder %s18, 1
      %s367 = scalar_select %p366, %s18, 1
      %p368 = scmp.lt.s32.totalorder %s19, 0
      %s369 = scalar_select %p368, %s19, 0
      %s370 = smul.addr %s367, 4
      %s371 = sadd.s32 %s369, %s370
      %s372 = smul.addr %s371, 8
      %s373 = scalar_lea.vmem %s3, %s372
      // Predicated region
      $region33: #{tpu_custom_call.1} parent=31 // pred_check
        %p374 = pneg %p121
      $region34: #{tpu_custom_call.1} parent=31 // pred_check_branch
        %376 = sbr.rel (%p374) target = $region36
      $region35: #{tpu_custom_call.1} parent=31 // pred_region
        _
      $region36: #{tpu_custom_call.1} parent=31 // pred_fallthru
        _
    $region32: #{tpu_custom_call.1} parent=5 // pred_fallthru
      _
    %p377 = scmp.le.s32.totalorder 2, %s9
    // Predicated region
    $region37: #{tpu_custom_call.1} parent=5 // pred_check
      %p378 = pneg %p377
    $region38: #{tpu_custom_call.1} parent=5 // pred_check_branch
      %380 = sbr.rel (%p378) target = $region40
    $region39: #{tpu_custom_call.1} parent=5 // pred_region
      %s381 = ssub.s32 %s9, 2
      // Predicated region
      $region41: #{tpu_custom_call.1} parent=39 // pred_check
        %p382 = pneg %p127
      $region42: #{tpu_custom_call.1} parent=39 // pred_check_branch
        %384 = sbr.rel (%p382) target = $region44
      $region43: #{tpu_custom_call.1} parent=39 // pred_region
        %p385 = scmp.lt.s32.totalorder %s20, 1
        %s386 = scalar_select %p385, %s20, 1
        %p387 = scmp.lt.s32.totalorder %s21, 0
        %s388 = scalar_select %p387, %s21, 0
        %s389 = smul.addr %s386, 4
        %s390 = sadd.s32 %s388, %s389
        %s391 = smul.addr %s390, 8
        %s392 = scalar_lea.vmem %s3, %s391
      $region44: #{tpu_custom_call.1} parent=39 // pred_fallthru
        _
    $region40: #{tpu_custom_call.1} parent=5 // pred_fallthru
      _
  $region6: #{tpu_custom_call.1} parent=0 // loop_footer
    %s13 = sadd.s32 1, %s9
  $region7: #{tpu_custom_call.1} parent=0 // loop_footer_branch
    %8 = sbr.rel target = $region3
  $region8: #{tpu_custom_call.1} parent=0 // loop_exit
    _

</llo_original>
